<compile_context>
chip_gen: v7x
topology: tpu7x:2x2x1
jax: 0.10.0
libtpu: 0.0.40
codegen_flags: <defaults>
</compile_context>

<pallas_src>
import functools

import jax
import jax.numpy as jnp
from jax.experimental import pallas as pl
from jax.experimental.pallas import tpu as pltpu


LEAKY_SLOPE = 0.01     # nn.LeakyReLU default negative_slope
LANE = 128             # fused A|B lane width: A in cols [0:64), B in [64:128)
HALF = LANE // 2
ROW_ALIGN = 16         # bf16 packs 2 rows/sublane -> 16-row segment alignment


def _round_up(n, m):
    return ((n + m - 1) // m) * m


# ----------------------------------------------------------------------------
# Kernel
# ----------------------------------------------------------------------------
def double_dqn_fused_kernel(x_ref, p_ref, qa_ref, qb_ref, *,
                            segments, n_layers, action_dim):
    """x_ref: (tb, xp_dim) bf16.  p_ref: packed bf16 param blob (R, LANE).
    qa_ref / qb_ref: (tb, action_dim) f32 (A's / B's Q-values)."""
    h = x_ref[...]                                        # bf16 activations
    for l, (w_off, w_rows, b_off) in enumerate(segments):
        w = p_ref[w_off:w_off + w_rows, :]                # static 16-aligned slice
        b = p_ref[b_off:b_off + 1, :]                     # (1, LANE) bias row
        y = jnp.dot(h, w, preferred_element_type=jnp.float32)   # bf16 MXU, f32 acc
        y = y + b.astype(jnp.float32)
        if l < n_layers - 1:
            # LeakyReLU: max(x, slope*x) (valid for slope in [0, 1]).
            y = jnp.maximum(y, LEAKY_SLOPE * y)
            h = y.astype(jnp.bfloat16)                    # bf16 for the next MXU pass
        else:
            h = y                                         # final layer stays f32
    qa_ref[...] = h[:, :action_dim].astype(qa_ref.dtype)
    qb_ref[...] = h[:, HALF:HALF + action_dim].astype(qb_ref.dtype)


# ----------------------------------------------------------------------------
# Parameter packing (done ONCE, outside the per-call forward path)
# ----------------------------------------------------------------------------
def pack_double_params(params_a, params_b, state_dim, action_dim, hid_dims):
    """Pack both estimators into one (R, LANE) bf16 blob.

    Layout per layer l:
      layer 0:   W rows [0:xp_dim) (state features, zero-padded to 16-multiple);
                 A weights in cols [0:h0), B weights in cols [HALF:HALF+h0).
      layer l>0: W is (LANE, LANE) block-diagonal:
                 rows[0:in) x cols[0:out)              = A.W
                 rows[HALF:HALF+in) x cols[HALF:...)   = B.W
      bias:      16-row slot; row 0 holds A bias at [0:out), B at [HALF:...).
    All segment row offsets are multiples of 16 -> no bf16 tile-crossing slices.
    """
    dims = [state_dim] + list(hid_dims) + [action_dim]
    n_layers = len(dims) - 1
    # TODO(synk): generalize packing for hidden/action dims > LANE//2.
    assert max(dims[1:]) <= HALF, "fused A/B width must fit in LANE//2 (<=64)"

    xp_dim = _round_up(state_dim, ROW_ALIGN)

    rows, segments = [], []
    cur = 0
    for l in range(n_layers):
        in_d, out_d = dims[l], dims[l + 1]
        wa, ba = params_a[l]      # wa: (in_d, out_d), ba: (1, out_d)
        wb, bb = params_b[l]
        if l == 0:
            w_rows = xp_dim
            W = jnp.zeros((w_rows, LANE), jnp.float32)
            W = W.at[:in_d, :out_d].set(wa)
            W = W.at[:in_d, HALF:HALF + out_d].set(wb)
        else:
            w_rows = LANE
            W = jnp.zeros((LANE, LANE), jnp.float32)
            W = W.at[:in_d, :out_d].set(wa)
            W = W.at[HALF:HALF + in_d, HALF:HALF + out_d].set(wb)
        Bslot = jnp.zeros((ROW_ALIGN, LANE), jnp.float32)
        Bslot = Bslot.at[0, :out_d].set(ba[0])
        Bslot = Bslot.at[0, HALF:HALF + out_d].set(bb[0])

        w_off = cur
        rows.append(W)
        cur += w_rows
        b_off = cur
        rows.append(Bslot)
        cur += ROW_ALIGN
        segments.append((w_off, w_rows, b_off))

    blob = jnp.concatenate(rows, axis=0).astype(jnp.bfloat16)
    return blob, tuple(segments), n_layers, xp_dim


# ----------------------------------------------------------------------------
# Forward factory (packs once, returns a jitted forward fn)
# ----------------------------------------------------------------------------
def make_double_dqn_forward(params_a, params_b, state_dim, action_dim, hid_dims):
    dims = [state_dim] + list(hid_dims) + [action_dim]
    assert max(dims[1:]) <= HALF, "fused A/B width must fit in LANE//2 (<=64)"

    blob, segments, n_layers, xp_dim = pack_double_params(
        params_a, params_b, state_dim, action_dim, hid_dims)

    kernel = functools.partial(double_dqn_fused_kernel, segments=segments,
                               n_layers=n_layers, action_dim=action_dim)

    @jax.jit
    def forward(x, blob):
        B = x.shape[0]
        # bf16 activations; zero-pad state features to the 16-aligned width
        # (padded columns hit zero weight rows -> exact no-op).
        xp = jnp.pad(x.astype(jnp.bfloat16), ((0, 0), (0, xp_dim - state_dim)))

        # Batch tile: large enough to amortize per-step overhead, >= 2 blocks
        # whenever B allows (so v7x's 2nd TensorCore gets a shard), capped at
        # 2048 rows (per-block VMEM stays far under every generation's budget,
        # including v5e's 16 MiB default scoped limit).
        if B <= ROW_ALIGN:
            tb = B
        else:
            tb = min(2048, _round_up(pl.cdiv(B, 2), ROW_ALIGN))
        grid = (pl.cdiv(B, tb),)

        qa, qb = pl.pallas_call(
            kernel,
            out_shape=(jax.ShapeDtypeStruct((B, action_dim), jnp.float32),
                       jax.ShapeDtypeStruct((B, action_dim), jnp.float32)),
            grid=grid,
            in_specs=[
                pl.BlockSpec((tb, xp_dim), lambda i: (i, 0)),
                pl.BlockSpec(blob.shape, lambda i: (0, 0)),   # whole blob, 1 DMA
            ],
            out_specs=(pl.BlockSpec((tb, action_dim), lambda i: (i, 0)),
                       pl.BlockSpec((tb, action_dim), lambda i: (i, 0))),
            compiler_params=pltpu.CompilerParams(
                dimension_semantics=("parallel",)),
        )(xp, blob)
        return qa, qb

    return lambda x: forward(x, blob)


# ----------------------------------------------------------------------------
# Init mirroring the PyTorch module
# ----------------------------------------------------------------------------
def _xavier_uniform(key, out_dim, in_dim):
    bound = (6.0 / (in_dim + out_dim)) ** 0.5
    # PyTorch weight shape is (out, in); sample that way, then transpose.
    w = jax.random.uniform(key, (out_dim, in_dim), jnp.float32, -bound, bound)
    return w.T  # (in, out)


def init_quality_estimator(key, state_dim, action_dim, hid_dims):
    """Mirrors QualityEstimator.__init__ + init_weights (bias = 0.01)."""
    dims = [state_dim] + list(hid_dims) + [action_dim]
    params = []
    for i in range(len(dims) - 1):
        key, sub = jax.random.split(key)
        w_t = _xavier_uniform(sub, dims[i + 1], dims[i])        # (in, out)
        b = jnp.full((1, dims[i + 1]), 0.01, jnp.float32)       # bias = 0.01
        params.append((w_t, b))
    return key, params


if __name__ == "__main__":
    state_dim = 16
    action_dim = 4
    hid_dims = [32, 32]

    key = jax.random.PRNGKey(0)
    key, params_a = init_quality_estimator(key, state_dim, action_dim, hid_dims)
    key, params_b = init_quality_estimator(key, state_dim, action_dim, hid_dims)

    fwd = make_double_dqn_forward(params_a, params_b,
                                  state_dim, action_dim, hid_dims)

    # Pure-JAX reference that mirrors the kernel's precision policy
    # (bf16 weights/activations, f32 accumulation) so tolerances stay tight.
    def ref_mlp(x, params):
        h = x.astype(jnp.bfloat16)
        n = len(params)
        for i, (w, b) in enumerate(params):
            y = jnp.dot(h, w.astype(jnp.bfloat16),
                        preferred_element_type=jnp.float32)
            y = y + b.astype(jnp.bfloat16).astype(jnp.float32)
            if i < n - 1:
                y = jnp.maximum(y, LEAKY_SLOPE * y)
                h = y.astype(jnp.bfloat16)
            else:
                h = y
        return h

    for batch in (8, 64):   # single-block grid and 2-block grid
        key, sub = jax.random.split(key)
        x = jax.random.normal(sub, (batch, state_dim), jnp.float32)

        qa, qb = fwd(x)
        jax.block_until_ready((qa, qb))

        ref_a = ref_mlp(x, params_a)
        ref_b = ref_mlp(x, params_b)
        assert qa.shape == (batch, action_dim) and qb.shape == (batch, action_dim)
        assert jnp.allclose(qa, ref_a, atol=2e-3, rtol=2e-3), "qa mismatch"
        assert jnp.allclose(qb, ref_b, atol=2e-3, rtol=2e-3), "qb mismatch"

    print("KERNEL_OK")
</pallas_src>

<mosaic_0001>
module attributes {stable_mosaic.version = 11 : i64} {
  func.func @double_dqn_fused_kernel(%arg0: i32, %arg1: memref<8x16xbf16, #tpu.memory_space<vmem>>, %arg2: memref<320x128xbf16, #tpu.memory_space<vmem>>, %arg3: memref<8x4xf32, #tpu.memory_space<vmem>>, %arg4: memref<8x4xf32, #tpu.memory_space<vmem>>) attributes {dimension_semantics = [#tpu.dimension_semantics<parallel>], iteration_bounds = array<i64: 1>, scalar_prefetch = 0 : i64, scratch_operands = 0 : i64, tpu.core_type = #tpu.core_type<tc>, window_params = [{transform_indices = @transform_0, window_bounds = array<i64: 8, 16>}, {pipeline_mode = #tpu.pipeline_mode<synchronous>, transform_indices = @transform_1, window_bounds = array<i64: 320, 128>}, {transform_indices = @transform_2, window_bounds = array<i64: 8, 4>}, {transform_indices = @transform_3, window_bounds = array<i64: 8, 4>}]} {
    %c0 = arith.constant 0 : index
    %c0_0 = arith.constant 0 : index
    %0 = vector.load %arg1[%c0, %c0_0] : memref<8x16xbf16, #tpu.memory_space<vmem>>, vector<8x16xbf16>
    %c0_1 = arith.constant 0 : index
    %c0_2 = arith.constant 0 : index
    %1 = vector.load %arg2[%c0_1, %c0_2] : memref<320x128xbf16, #tpu.memory_space<vmem>>, vector<16x128xbf16>
    %c16 = arith.constant 16 : index
    %c0_3 = arith.constant 0 : index
    %2 = vector.load %arg2[%c16, %c0_3] : memref<320x128xbf16, #tpu.memory_space<vmem>>, vector<1x128xbf16>
    %cst = arith.constant dense<0.000000e+00> : vector<8x128xf32>
    %3 = tpu.matmul %0, %1, %cst {dimension_numbers = #tpu.dot_dimension_numbers<[1], [0], [0], [1], [0, 0, 1, 1], [], []>} : vector<8x16xbf16>, vector<16x128xbf16>, vector<8x128xf32> -> vector<8x128xf32>
    %4 = arith.extf %2 : vector<1x128xbf16> to vector<1x128xf32>
    %5 = vector.broadcast %4 : vector<1x128xf32> to vector<8x128xf32>
    %6 = arith.addf %3, %5 : vector<8x128xf32>
    %cst_4 = arith.constant 0.00999999977 : f32
    %7 = vector.broadcast %cst_4 : f32 to vector<8x128xf32>
    %8 = arith.mulf %7, %6 : vector<8x128xf32>
    %9 = arith.maximumf %6, %8 : vector<8x128xf32>
    %10 = arith.truncf %9 : vector<8x128xf32> to vector<8x128xbf16>
    %c32 = arith.constant 32 : index
    %c0_5 = arith.constant 0 : index
    %11 = vector.load %arg2[%c32, %c0_5] : memref<320x128xbf16, #tpu.memory_space<vmem>>, vector<128x128xbf16>
    %c160 = arith.constant 160 : index
    %c0_6 = arith.constant 0 : index
    %12 = vector.load %arg2[%c160, %c0_6] : memref<320x128xbf16, #tpu.memory_space<vmem>>, vector<1x128xbf16>
    %cst_7 = arith.constant dense<0.000000e+00> : vector<8x128xf32>
    %13 = tpu.matmul %10, %11, %cst_7 {dimension_numbers = #tpu.dot_dimension_numbers<[1], [0], [0], [1], [0, 0, 1, 1], [], []>} : vector<8x128xbf16>, vector<128x128xbf16>, vector<8x128xf32> -> vector<8x128xf32>
    %14 = arith.extf %12 : vector<1x128xbf16> to vector<1x128xf32>
    %15 = vector.broadcast %14 : vector<1x128xf32> to vector<8x128xf32>
    %16 = arith.addf %13, %15 : vector<8x128xf32>
    %cst_8 = arith.constant 0.00999999977 : f32
    %17 = vector.broadcast %cst_8 : f32 to vector<8x128xf32>
    %18 = arith.mulf %17, %16 : vector<8x128xf32>
    %19 = arith.maximumf %16, %18 : vector<8x128xf32>
    %20 = arith.truncf %19 : vector<8x128xf32> to vector<8x128xbf16>
    %c176 = arith.constant 176 : index
    %c0_9 = arith.constant 0 : index
    %21 = vector.load %arg2[%c176, %c0_9] : memref<320x128xbf16, #tpu.memory_space<vmem>>, vector<128x128xbf16>
    %c304 = arith.constant 304 : index
    %c0_10 = arith.constant 0 : index
    %22 = vector.load %arg2[%c304, %c0_10] : memref<320x128xbf16, #tpu.memory_space<vmem>>, vector<1x128xbf16>
    %cst_11 = arith.constant dense<0.000000e+00> : vector<8x128xf32>
    %23 = tpu.matmul %20, %21, %cst_11 {dimension_numbers = #tpu.dot_dimension_numbers<[1], [0], [0], [1], [0, 0, 1, 1], [], []>} : vector<8x128xbf16>, vector<128x128xbf16>, vector<8x128xf32> -> vector<8x128xf32>
    %24 = arith.extf %22 : vector<1x128xbf16> to vector<1x128xf32>
    %25 = vector.broadcast %24 : vector<1x128xf32> to vector<8x128xf32>
    %26 = arith.addf %23, %25 : vector<8x128xf32>
    %27 = vector.extract_strided_slice %26 {offsets = [0, 0], sizes = [8, 4], strides = [1, 1]} : vector<8x128xf32> to vector<8x4xf32>
    %c0_12 = arith.constant 0 : index
    %c0_13 = arith.constant 0 : index
    %28 = vector.load %arg3[%c0_12, %c0_13] : memref<8x4xf32, #tpu.memory_space<vmem>>, vector<8x4xf32>
    tpu.vector_store %arg3[%c0_12, %c0_13], %27 {strides = array<i32>} : memref<8x4xf32, #tpu.memory_space<vmem>>, vector<8x4xf32>,
    %29 = vector.extract_strided_slice %26 {offsets = [0, 64], sizes = [8, 4], strides = [1, 1]} : vector<8x128xf32> to vector<8x4xf32>
    %c0_14 = arith.constant 0 : index
    %c0_15 = arith.constant 0 : index
    %30 = vector.load %arg4[%c0_14, %c0_15] : memref<8x4xf32, #tpu.memory_space<vmem>>, vector<8x4xf32>
    tpu.vector_store %arg4[%c0_14, %c0_15], %29 {strides = array<i32>} : memref<8x4xf32, #tpu.memory_space<vmem>>, vector<8x4xf32>,
    return
  }
  func.func @transform_0(%arg0: i32) -> (i32, i32) {
    %c0_i32 = arith.constant 0 : i32
    %c0_i32_0 = arith.constant 0 : i32
    return %arg0, %c0_i32 : i32, i32
  }
  func.func @transform_1(%arg0: i32) -> (i32, i32) {
    %c0_i32 = arith.constant 0 : i32
    %c0_i32_0 = arith.constant 0 : i32
    %c0_i32_1 = arith.constant 0 : i32
    return %c0_i32, %c0_i32_0 : i32, i32
  }
  func.func @transform_2(%arg0: i32) -> (i32, i32) {
    %c0_i32 = arith.constant 0 : i32
    %c0_i32_0 = arith.constant 0 : i32
    return %arg0, %c0_i32 : i32, i32
  }
  func.func @transform_3(%arg0: i32) -> (i32, i32) {
    %c0_i32 = arith.constant 0 : i32
    %c0_i32_0 = arith.constant 0 : i32
    return %arg0, %c0_i32 : i32, i32
  }
}

</mosaic_0001>

<llo_original>
// kernel: forward.1
$region0: #{forward.1}
  #allocation0 [shape = 'u32[]', space=smem, size = 0x4, offset = 0x4, fixed_abs, tag = 'smem constant byte address 0x4 - core index']
  #allocation1 [shape = 'u32[144,128]{1,0:T(1,128)}', space=vmem, size = 0x12000, scoped, tag = 'internal scratch']
  %s0 = inlined_call_operand.vmem [shape: bf16[8,16], index: 0, kind: input, shape index: {}]
  %s1 = inlined_call_operand.hbm [shape: bf16[320,128], index: 1, kind: input, shape index: {}]
  %s2 = inlined_call_operand.vmem [shape: f32[8,4], index: 2, kind: output, shape index: {0}]
  %s3 = inlined_call_operand.vmem [shape: f32[8,4], index: 3, kind: output, shape index: {1}]
  %4 = xla_tuple %s2, %s3
  %s5 = sld [smem:[#allocation0]]
  $region30: #{forward.1} parent=0
    _
  %s7 = ssub.s32 1, %s5
  %s8 = scalar_select 0, %s7, %s5
  $region1: #{forward.1} parent=0
    #allocation2 [shape = 'u8[81920]{0}', space=vmem, size = 0x14000, scoped, tag = 'input window, operand 1, single buffered']
    #allocation3 [shape = 's32[1]{0}', space=sflag, size = 0x4, scoped, tag = 'scoped memory for forward.1']
    %9 = vsyncpa [#allocation3], 0
    // Predicated region
    $region2: #{forward.1} parent=1 // pred_check
      _
    $region3: #{forward.1} parent=1 // pred_check_branch
      %11 = sbr.rel (0) target = $region5
    $region4: #{forward.1} parent=1 // pred_region
      _
    $region5: #{forward.1} parent=1 // pred_fallthru
      _
    // Predicated region
    $region6: #{forward.1} parent=1 // pred_check
      _
    $region7: #{forward.1} parent=1 // pred_check_branch
      %13 = sbr.rel (0) target = $region9
    $region8: #{forward.1} parent=1 // pred_region
      %s15 = ssub.s32 2560, 2560
      %16 = vsyncadd [#allocation3], %s15
      %s17 = sshll.u32 [#allocation2], 4
      %s18 = int_to_ptr.vmem [resolvable:$true] %s17
      %23 = dma.hbm_to_vmem [thread:$0]  %s1, 2560, %s18, [#allocation3], 64, 64, 4
    $region9: #{forward.1} parent=1 // pred_fallthru
      _
    // Predicated region
    $region10: #{forward.1} parent=1 // pred_check
      _
    $region11: #{forward.1} parent=1 // pred_check_branch
      %25 = sbr.rel (0) target = $region13
    $region12: #{forward.1} parent=1 // pred_region
      %26 = dma.done [#allocation3], 2560
    $region13: #{forward.1} parent=1 // pred_fallthru
      _
    %v28 = vld [vmem:[%s0] sm:$0xf]
    %v29 = vld [vmem:[#allocation2] sm:$0xf]
    %v30 = vld [vmem:[#allocation2 + $0x4] sm:$0xf]
    %v31 = vld [vmem:[#allocation2 + $0x8] sm:$0x1]
    %v32 = vunpack.c.l.bf16 %v31
    %v33 = vlaneseq
    %v34 = vshrl.u32 %v33, 7
    %v35 = vsub.s32 0, %v34
    %v36 = vrot.slane %v32, %v35
    %v39 = vunpack.c.l.b16 %v29
    %v40 = vunpack.c.l.b16 %v30
    %v41 = vpack.c.b16 %v40, %v39
    %vm43 = vcmask 130048
    %v45 = vsel %vm43, %v28, 0
    %47 = vmatprep.subr.bf16.mxu0 0
    %48 = vmatpush1.bf16.msra.mxu0 %v41
    %49 = vmatprep.subr.bf16.mxu0 0
    %50 = vmatpush1.bf16.msra.mxu0 0
    %51 = vmatprep.subr.bf16.mxu0 0
    %52 = vmatpush1.bf16.msra.mxu0 0
    %53 = vmatprep.subr.bf16.mxu0 0
    %54 = vmatpush1.bf16.msra.mxu0 0
    %55 = vmatprep.subr.bf16.mxu0 0
    %56 = vmatpush1.bf16.msra.mxu0 0
    %57 = vmatprep.subr.bf16.mxu0 0
    %58 = vmatpush1.bf16.msra.mxu0 0
    %59 = vmatprep.subr.bf16.mxu0 0
    %60 = vmatpush1.bf16.msra.mxu0 0
    %61 = vmatprep.subr.bf16.mxu0 0
    %62 = vmatpush1.bf16.msra.mxu0 0
    %63 = vmatprep.subr.bf16.mxu0 0
    %64 = vmatpush1.bf16.msra.mxu0 0
    %65 = vmatprep.subr.bf16.mxu0 0
    %66 = vmatpush1.bf16.msra.mxu0 0
    %67 = vmatprep.subr.bf16.mxu0 0
    %68 = vmatpush1.bf16.msra.mxu0 0
    %69 = vmatprep.subr.bf16.mxu0 0
    %70 = vmatpush1.bf16.msra.mxu0 0
    %71 = vmatprep.subr.bf16.mxu0 0
    %72 = vmatpush1.bf16.msra.mxu0 0
    %73 = vmatprep.subr.bf16.mxu0 0
    %74 = vmatpush1.bf16.msra.mxu0 0
    %75 = vmatprep.subr.bf16.mxu0 0
    %76 = vmatpush1.bf16.msra.mxu0 0
    %77 = vmatprep.subr.bf16.mxu0 0
    %78 = vmatpush1.bf16.msra.mxu0 0
    %79 = vmatprep.mubr.bf16.mxu0 0
    %80 = vmatmul.mubr.bf16.gmra.mrb[0].mxu0 %v45
    %v81 = vpop.f32.mrb[0].mxu0
    %v82 = vadd.f32 %v36, %v81
    %v83 = vpop.f32.mrb[0].mxu0
    %v84 = vpop.f32.mrb[0].mxu0
    %v85 = vpop.f32.mrb[0].mxu0
    %86 = vdwg.mxu0
    %v87 = vmul.f32 %v82, 0.01
    %v88 = vmax.f32 %v82, %v87
    %v89 = vpack.c.bf16 %v88, %v88
    %v90 = vld [vmem:[#allocation2 + $0x10] sm:$0xf]
    %v91 = vld [vmem:[#allocation2 + $0x14] sm:$0xf]
    %v92 = vld [vmem:[#allocation2 + $0x18] sm:$0xf]
    %v93 = vld [vmem:[#allocation2 + $0x1c] sm:$0xf]
    %v94 = vld [vmem:[#allocation2 + $0x20] sm:$0xf]
    %v95 = vld [vmem:[#allocation2 + $0x24] sm:$0xf]
    %v96 = vld [vmem:[#allocation2 + $0x28] sm:$0xf]
    %v97 = vld [vmem:[#allocation2 + $0x2c] sm:$0xf]
    %v98 = vld [vmem:[#allocation2 + $0x30] sm:$0xf]
    %v99 = vld [vmem:[#allocation2 + $0x34] sm:$0xf]
    %v100 = vld [vmem:[#allocation2 + $0x38] sm:$0xf]
    %v101 = vld [vmem:[#allocation2 + $0x3c] sm:$0xf]
    %v102 = vld [vmem:[#allocation2 + $0x40] sm:$0xf]
    %v103 = vld [vmem:[#allocation2 + $0x44] sm:$0xf]
    %v104 = vld [vmem:[#allocation2 + $0x48] sm:$0xf]
    %v105 = vld [vmem:[#allocation2 + $0x4c] sm:$0xf]
    %v106 = vld [vmem:[#allocation2 + $0x50] sm:$0x1]
    %v107 = vunpack.c.l.bf16 %v106
    %v108 = vlaneseq
    %v109 = vshrl.u32 %v108, 7
    %v110 = vsub.s32 0, %v109
    %v111 = vrot.slane %v107, %v110
    %v128 = vunpack.c.l.b16 %v90
    %v129 = vunpack.c.l.b16 %v91
    %v130 = vunpack.c.l.b16 %v92
    %v131 = vunpack.c.l.b16 %v93
    %v132 = vunpack.c.l.b16 %v94
    %v133 = vunpack.c.l.b16 %v95
    %v134 = vunpack.c.l.b16 %v96
    %v135 = vunpack.c.l.b16 %v97
    %v136 = vunpack.c.l.b16 %v98
    %v137 = vunpack.c.l.b16 %v99
    %v138 = vunpack.c.l.b16 %v100
    %v139 = vunpack.c.l.b16 %v101
    %v140 = vunpack.c.l.b16 %v102
    %v141 = vunpack.c.l.b16 %v103
    %v142 = vunpack.c.l.b16 %v104
    %v143 = vunpack.c.l.b16 %v105
    %v144 = vpack.c.b16 %v129, %v128
    %v145 = vpack.c.b16 %v131, %v130
    %v146 = vpack.c.b16 %v133, %v132
    %v147 = vpack.c.b16 %v135, %v134
    %v148 = vpack.c.b16 %v137, %v136
    %v149 = vpack.c.b16 %v139, %v138
    %v150 = vpack.c.b16 %v141, %v140
    %v151 = vpack.c.b16 %v143, %v142
    %160 = vmatprep.subr.bf16.mxu0 0
    %161 = vmatpush1.bf16.msra.mxu0 %v144
    %162 = vmatprep.subr.bf16.mxu0 0
    %163 = vmatpush1.bf16.msra.mxu0 %v145
    %164 = vmatprep.subr.bf16.mxu0 0
    %165 = vmatpush1.bf16.msra.mxu0 %v146
    %166 = vmatprep.subr.bf16.mxu0 0
    %167 = vmatpush1.bf16.msra.mxu0 %v147
    %168 = vmatprep.subr.bf16.mxu0 0
    %169 = vmatpush1.bf16.msra.mxu0 %v148
    %170 = vmatprep.subr.bf16.mxu0 0
    %171 = vmatpush1.bf16.msra.mxu0 %v149
    %172 = vmatprep.subr.bf16.mxu0 0
    %173 = vmatpush1.bf16.msra.mxu0 %v150
    %174 = vmatprep.subr.bf16.mxu0 0
    %175 = vmatpush1.bf16.msra.mxu0 %v151
    %176 = vmatprep.subr.bf16.mxu0 0
    %177 = vmatpush1.bf16.msra.mxu0 0
    %178 = vmatprep.subr.bf16.mxu0 0
    %179 = vmatpush1.bf16.msra.mxu0 0
    %180 = vmatprep.subr.bf16.mxu0 0
    %181 = vmatpush1.bf16.msra.mxu0 0
    %182 = vmatprep.subr.bf16.mxu0 0
    %183 = vmatpush1.bf16.msra.mxu0 0
    %184 = vmatprep.subr.bf16.mxu0 0
    %185 = vmatpush1.bf16.msra.mxu0 0
    %186 = vmatprep.subr.bf16.mxu0 0
    %187 = vmatpush1.bf16.msra.mxu0 0
    %188 = vmatprep.subr.bf16.mxu0 0
    %189 = vmatpush1.bf16.msra.mxu0 0
    %190 = vmatprep.subr.bf16.mxu0 0
    %191 = vmatpush1.bf16.msra.mxu0 0
    %192 = vmatprep.mubr.bf16.mxu0 0
    %193 = vmatmul.mubr.bf16.gmra.mrb[0].mxu0 %v89
    %v194 = vpop.f32.mrb[0].mxu0
    %v195 = vadd.f32 %v111, %v194
    %v196 = vpop.f32.mrb[0].mxu0
    %v197 = vpop.f32.mrb[0].mxu0
    %v198 = vpop.f32.mrb[0].mxu0
    %199 = vdwg.mxu0
    %v200 = vmul.f32 %v195, 0.01
    %v201 = vmax.f32 %v195, %v200
    %v202 = vpack.c.bf16 %v201, %v201
    %v203 = vld [vmem:[#allocation2 + $0x58] sm:$0xf]
    %v204 = vld [vmem:[#allocation2 + $0x5c] sm:$0xf]
    %v205 = vld [vmem:[#allocation2 + $0x60] sm:$0xf]
    %v206 = vld [vmem:[#allocation2 + $0x64] sm:$0xf]
    %v207 = vld [vmem:[#allocation2 + $0x68] sm:$0xf]
    %v208 = vld [vmem:[#allocation2 + $0x6c] sm:$0xf]
    %v209 = vld [vmem:[#allocation2 + $0x70] sm:$0xf]
    %v210 = vld [vmem:[#allocation2 + $0x74] sm:$0xf]
    %v211 = vld [vmem:[#allocation2 + $0x78] sm:$0xf]
    %v212 = vld [vmem:[#allocation2 + $0x7c] sm:$0xf]
    %v213 = vld [vmem:[#allocation2 + $0x80] sm:$0xf]
    %v214 = vld [vmem:[#allocation2 + $0x84] sm:$0xf]
    %v215 = vld [vmem:[#allocation2 + $0x88] sm:$0xf]
    %v216 = vld [vmem:[#allocation2 + $0x8c] sm:$0xf]
    %v217 = vld [vmem:[#allocation2 + $0x90] sm:$0xf]
    %v218 = vld [vmem:[#allocation2 + $0x94] sm:$0xf]
    %v219 = vld [vmem:[#allocation2 + $0x98] sm:$0x1]
    %v220 = vunpack.c.l.bf16 %v219
    %v221 = vlaneseq
    %v222 = vshrl.u32 %v221, 7
    %v223 = vsub.s32 0, %v222
    %v224 = vrot.slane %v220, %v223
    %v241 = vunpack.c.l.b16 %v203
    %v242 = vunpack.c.l.b16 %v204
    %v243 = vunpack.c.l.b16 %v205
    %v244 = vunpack.c.l.b16 %v206
    %v245 = vunpack.c.l.b16 %v207
    %v246 = vunpack.c.l.b16 %v208
    %v247 = vunpack.c.l.b16 %v209
    %v248 = vunpack.c.l.b16 %v210
    %v249 = vunpack.c.l.b16 %v211
    %v250 = vunpack.c.l.b16 %v212
    %v251 = vunpack.c.l.b16 %v213
    %v252 = vunpack.c.l.b16 %v214
    %v253 = vunpack.c.l.b16 %v215
    %v254 = vunpack.c.l.b16 %v216
    %v255 = vunpack.c.l.b16 %v217
    %v256 = vunpack.c.l.b16 %v218
    %v257 = vpack.c.b16 %v242, %v241
    %v258 = vpack.c.b16 %v244, %v243
    %v259 = vpack.c.b16 %v246, %v245
    %v260 = vpack.c.b16 %v248, %v247
    %v261 = vpack.c.b16 %v250, %v249
    %v262 = vpack.c.b16 %v252, %v251
    %v263 = vpack.c.b16 %v254, %v253
    %v264 = vpack.c.b16 %v256, %v255
    %273 = vmatprep.subr.bf16.mxu0 0
    %274 = vmatpush1.bf16.msra.mxu0 %v257
    %275 = vmatprep.subr.bf16.mxu0 0
    %276 = vmatpush1.bf16.msra.mxu0 %v258
    %277 = vmatprep.subr.bf16.mxu0 0
    %278 = vmatpush1.bf16.msra.mxu0 %v259
    %279 = vmatprep.subr.bf16.mxu0 0
    %280 = vmatpush1.bf16.msra.mxu0 %v260
    %281 = vmatprep.subr.bf16.mxu0 0
    %282 = vmatpush1.bf16.msra.mxu0 %v261
    %283 = vmatprep.subr.bf16.mxu0 0
    %284 = vmatpush1.bf16.msra.mxu0 %v262
    %285 = vmatprep.subr.bf16.mxu0 0
    %286 = vmatpush1.bf16.msra.mxu0 %v263
    %287 = vmatprep.subr.bf16.mxu0 0
    %288 = vmatpush1.bf16.msra.mxu0 %v264
    %289 = vmatprep.subr.bf16.mxu0 0
    %290 = vmatpush1.bf16.msra.mxu0 0
    %291 = vmatprep.subr.bf16.mxu0 0
    %292 = vmatpush1.bf16.msra.mxu0 0
    %293 = vmatprep.subr.bf16.mxu0 0
    %294 = vmatpush1.bf16.msra.mxu0 0
    %295 = vmatprep.subr.bf16.mxu0 0
    %296 = vmatpush1.bf16.msra.mxu0 0
    %297 = vmatprep.subr.bf16.mxu0 0
    %298 = vmatpush1.bf16.msra.mxu0 0
    %299 = vmatprep.subr.bf16.mxu0 0
    %300 = vmatpush1.bf16.msra.mxu0 0
    %301 = vmatprep.subr.bf16.mxu0 0
    %302 = vmatpush1.bf16.msra.mxu0 0
    %303 = vmatprep.subr.bf16.mxu0 0
    %304 = vmatpush1.bf16.msra.mxu0 0
    %305 = vmatprep.mubr.bf16.mxu0 0
    %306 = vmatmul.mubr.bf16.gmra.mrb[0].mxu0 %v202
    %v307 = vpop.f32.mrb[0].mxu0
    %v308 = vadd.f32 %v224, %v307
    %v309 = vpop.f32.mrb[0].mxu0
    %v310 = vpop.f32.mrb[0].mxu0
    %v311 = vpop.f32.mrb[0].mxu0
    %312 = vdwg.mxu0
    %vm313 = vcmask 31744
    %314 = vst.msk [vmem:[%s2] sm:$0xff] %vm313, %v308
    %316 = vrot.lane.b32.xlu0 %v308, 64
    %v317 = vpop.permute.xlu0 %316
    %319 = vst.msk [vmem:[%s3] sm:$0xff] %vm313, %v317
    // Predicated region
    $region14: #{forward.1} parent=1 // pred_check
      _
    $region15: #{forward.1} parent=1 // pred_check_branch
      %321 = sbr.rel (0) target = $region17
    $region16: #{forward.1} parent=1 // pred_region
      _
    $region17: #{forward.1} parent=1 // pred_fallthru
      _
    // Predicated region
    $region18: #{forward.1} parent=1 // pred_check
      _
    $region19: #{forward.1} parent=1 // pred_check_branch
      %323 = sbr.rel (0) target = $region21
    $region20: #{forward.1} parent=1 // pred_region
      _
    $region21: #{forward.1} parent=1 // pred_fallthru
      _
    // Predicated region
    $region22: #{forward.1} parent=1 // pred_check
      _
    $region23: #{forward.1} parent=1 // pred_check_branch
      %325 = sbr.rel (0) target = $region25
    $region24: #{forward.1} parent=1 // pred_region
      _
    $region25: #{forward.1} parent=1 // pred_fallthru
      _
    // Predicated region
    $region26: #{forward.1} parent=1 // pred_check
      _
    $region27: #{forward.1} parent=1 // pred_check_branch
      %327 = sbr.rel (0) target = $region29
    $region28: #{forward.1} parent=1 // pred_region
      _
    $region29: #{forward.1} parent=1 // pred_fallthru
      _
    %328 = vsyncpa [#allocation3], 1

</llo_original>
